<compile_context>
chip_gen: v5e
topology: v5e:2x2
jax: 0.10.0
libtpu: 0.0.40
codegen_flags: <defaults>
</compile_context>

<pallas_src>
import functools

import jax
import jax.numpy as jnp
from jax import lax
from jax.experimental import pallas as pl
from jax.experimental.pallas import tpu as pltpu

LANES = 128
SUBLANES = 8
# Finite "minus infinity" so exp(m_old - m_new) never sees inf - inf (NaN).
NEG_INIT = float(jnp.finfo(jnp.float32).min)


def _cdiv(a, b):
    return (a + b - 1) // b


def _round_up(a, b):
    return _cdiv(a, b) * b


def _row_align(dtype):
    # Sublane tile for the dtype: 8 rows at 32-bit, 16 at 16-bit, 32 at 8-bit.
    return max(SUBLANES, 32 // jnp.dtype(dtype).itemsize)


def _tpu_defaults():
    """Returns (num_tensorcores, default tm rows) for the local TPU generation."""
    try:
        kind = jax.devices()[0].device_kind.lower()
    except Exception:
        kind = ""
    if "v7" in kind or "tpu7" in kind:
        return 2, 8192      # 2 TCs/chip; 24 MiB of f32 input blocks per core
    return 1, 8192          # v5e / v6e: single TensorCore per chip


def _custom_loss_kernel(a_ref, b_ref, c_ref, mo_ref, so_ref, wo_ref,
                        m_vec, s_vec, w_vec, *,
                        n_valid, tm, chunk, blocks_per_core,
                        needs_mask, first_masked_block):
    c_idx = pl.program_id(0)          # "core" (parallel) index
    i_idx = pl.program_id(1)          # sequential block index within this core

    @pl.when(i_idx == 0)
    def _init():
        m_vec[...] = jnp.full((SUBLANES, LANES), NEG_INIT, jnp.float32)
        s_vec[...] = jnp.zeros((SUBLANES, LANES), jnp.float32)
        w_vec[...] = jnp.zeros((SUBLANES, LANES), jnp.float32)

    def fold(carry, d, l):
        # (r,128) -> fold groups of 8 rows into (8,128) accumulators: pure VPU
        # elementwise max/exp/mul/add across vregs, no cross-lane work.
        m_old, s_old, w_old = carry
        r = d.shape[0]
        d3 = d.reshape(r // SUBLANES, SUBLANES, LANES)
        l3 = l.reshape(r // SUBLANES, SUBLANES, LANES)
        m_new = jnp.maximum(m_old, jnp.max(d3, axis=0))
        alpha = jnp.exp(m_old - m_new)
        p = jnp.exp(d3 - m_new)
        s_new = s_old * alpha + jnp.sum(p, axis=0)
        w_new = w_old * alpha + jnp.sum(p * l3, axis=0)
        return m_new, s_new, w_new

    def run(masked):
        if masked:
            g = c_idx * blocks_per_core + i_idx              # global block index
            rem = jnp.int32(n_valid) - g * (tm * LANES)      # valid elems left in block

        def step(off, size, carry):
            a = a_ref[pl.ds(off, size), :].astype(jnp.float32)
            b = b_ref[pl.ds(off, size), :].astype(jnp.float32)
            c = c_ref[pl.ds(off, size), :].astype(jnp.float32)
            d = jnp.abs(b - a)
            l = jnp.abs(b - c)
            if masked:
                row = lax.broadcasted_iota(jnp.int32, (size, LANES), 0)
                lane = lax.broadcasted_iota(jnp.int32, (size, LANES), 1)
                valid = (off + row) * LANES + lane < rem
                d = jnp.where(valid, d, NEG_INIT)
                l = jnp.where(valid, l, 0.0)
            return fold(carry, d, l)

        n_full = tm // chunk
        tail = tm - n_full * chunk
        carry = (m_vec[...], s_vec[...], w_vec[...])
        if n_full > 0:
            def body(j, carry):
                off = pl.multiple_of(j * chunk, chunk)
                return step(off, chunk, carry)
            carry = lax.fori_loop(0, n_full, body, carry,
                                  unroll=2 if n_full >= 2 else 1)
        if tail:
            carry = step(n_full * chunk, tail, carry)
        m_vec[...], s_vec[...], w_vec[...] = carry

    if not needs_mask:
        run(masked=False)
    elif first_masked_block == 0:
        run(masked=True)
    else:
        g = c_idx * blocks_per_core + i_idx

        @pl.when(g < first_masked_block)
        def _fast():
            run(masked=False)

        @pl.when(g >= first_masked_block)
        def _ragged():
            run(masked=True)

    @pl.when(i_idx == pl.num_programs(1) - 1)
    def _finalize():
        mo_ref[...] = m_vec[...]
        so_ref[...] = s_vec[...]
        wo_ref[...] = w_vec[...]


def custom_loss(A, B, C, *, tm=None, num_cores=None, chunk=256):
    """Pallas implementation of CustomLoss.forward(A, B, C) -> scalar f32."""
    assert A.shape == B.shape == C.shape, "A, B, C must share a shape"
    n = int(A.size)
    assert n > 0, "empty input"

    dev_cores, dev_tm = _tpu_defaults()
    if num_cores is None:
        num_cores = dev_cores
    if tm is None:
        tm = dev_tm

    rows = _cdiv(n, LANES)
    pad = rows * LANES - n

    def prep(x):
        x = x.reshape(-1)
        if pad:
            x = jnp.pad(x, (0, pad))
        return x.reshape(rows, LANES)

    a2d, b2d, c2d = prep(A), prep(B), prep(C)

    # Row granularity: honour the widest sublane-tile requirement among inputs.
    row_align = max(_row_align(x.dtype) for x in (A, B, C))
    chunk = max(row_align, (chunk // row_align) * row_align)
    tm_target = max(chunk, (tm // chunk) * chunk)
    rows_a = _round_up(rows, row_align)

    if rows_a <= tm_target:
        nc, bpc, tm_eff = 1, 1, rows_a
    else:
        nc = num_cores if (num_cores > 1 and rows_a >= num_cores * tm_target) else 1
        bpc = _cdiv(rows_a, nc * tm_target)
        tm_eff = _round_up(_cdiv(rows_a, nc * bpc), chunk)
        if (nc * bpc - 1) * tm_eff >= rows:          # would create phantom blocks
            tm_eff = _round_up(_cdiv(rows_a, nc * bpc), row_align)
        if (nc * bpc - 1) * tm_eff >= rows:          # still phantom -> single core
            nc, bpc, tm_eff = 1, _cdiv(rows_a, tm_target), tm_target
    num_blocks = nc * bpc

    first_masked_block = n // (tm_eff * LANES)
    needs_mask = n < num_blocks * tm_eff * LANES

    # Safety net only; the sizing above does not produce phantom trailing blocks.
    last_data_block = (rows - 1) // tm_eff
    if last_data_block < num_blocks - 1:
        def in_map(c, i):
            return (jnp.minimum(c * bpc + i, last_data_block), 0)
    else:
        def in_map(c, i):
            return (c * bpc + i, 0)

    def out_map(c, i):
        return (c, 0)

    kernel = functools.partial(
        _custom_loss_kernel,
        n_valid=n, tm=tm_eff, chunk=min(chunk, tm_eff), blocks_per_core=bpc,
        needs_mask=needs_mask, first_masked_block=first_masked_block)

    # Double-buffered input blocks + headroom; clears v5e's 16 MiB default scoped
    # VMEM, stays under v7x's 64 MiB per-TC physical capacity.
    in_bytes = sum(2 * tm_eff * LANES * jnp.dtype(x.dtype).itemsize
                   for x in (A, B, C))
    vmem_limit = int(min(max(in_bytes + (16 << 20), 32 << 20), 64 << 20))

    cost = pl.CostEstimate(
        flops=9 * n, transcendentals=n,
        bytes_accessed=int(sum(x.size * jnp.dtype(x.dtype).itemsize
                               for x in (A, B, C))))

    part = jax.ShapeDtypeStruct((nc * SUBLANES, LANES), jnp.float32)
    m_p, s_p, w_p = pl.pallas_call(
        kernel,
        out_shape=(part, part, part),
        grid_spec=pltpu.PrefetchScalarGridSpec(
            num_scalar_prefetch=0,
            grid=(nc, bpc),
            in_specs=[
                pl.BlockSpec((tm_eff, LANES), in_map),
                pl.BlockSpec((tm_eff, LANES), in_map),
                pl.BlockSpec((tm_eff, LANES), in_map),
            ],
            out_specs=[
                pl.BlockSpec((SUBLANES, LANES), out_map),
                pl.BlockSpec((SUBLANES, LANES), out_map),
                pl.BlockSpec((SUBLANES, LANES), out_map),
            ],
            scratch_shapes=[
                pltpu.VMEM((SUBLANES, LANES), jnp.float32),  # running max
                pltpu.VMEM((SUBLANES, LANES), jnp.float32),  # running denominator
                pltpu.VMEM((SUBLANES, LANES), jnp.float32),  # running weighted numerator
            ],
        ),
        compiler_params=pltpu.CompilerParams(
            # TODO(synk): if xprof shows only one TensorCore active on v7x, switch
            # the leading grid axis to pltpu.CORE_PARALLEL.
            dimension_semantics=("parallel", "arbitrary"),
            vmem_limit_bytes=vmem_limit,
        ),
        cost_estimate=cost,
    )(a2d, b2d, c2d)

    # Tiny final combine of the per-core / per-(sublane,lane) partials (plain JAX).
    m = jnp.max(m_p)
    scale = jnp.exp(m_p - m)
    return jnp.sum(w_p * scale) / jnp.sum(s_p * scale)


def _reference_loss(A, B, C):
    d = jnp.abs(B - A).reshape(-1).astype(jnp.float32)
    l = jnp.abs(B - C).reshape(-1).astype(jnp.float32)
    return jnp.sum(jax.nn.softmax(d) * l)


if __name__ == "__main__":
    root = jax.random.PRNGKey(0)

    def check(shape, key, dtype=jnp.float32, tol=1e-4, **kwargs):
        kA, kB, kC = jax.random.split(key, 3)
        A = jax.random.normal(kA, shape, dtype=jnp.float32).astype(dtype)
        B = jax.random.normal(kB, shape, dtype=jnp.float32).astype(dtype)
        C = jax.random.normal(kC, shape, dtype=jnp.float32).astype(dtype)
        got = jax.block_until_ready(custom_loss(A, B, C, **kwargs))
        ref = jax.block_until_ready(_reference_loss(A, B, C))
        assert jnp.allclose(got, ref, rtol=tol, atol=tol), (shape, got, ref)

    k1, k2, k3, k4, k5 = jax.random.split(root, 5)
    check((2, 4, 16, 16), k1)                               # canonical case, 1 block
    check((3, 5, 7), k2)                                    # ragged n < 128 (masked)
    check((3, 3, 32, 32), k3, tm=16, chunk=16)              # multi-block + ragged tail
    check((4, 4, 64, 64), k4, tm=32, chunk=8)               # multi-block, multi-chunk
    check((2, 4, 16, 16), k5, dtype=jnp.bfloat16, tol=3e-2) # bf16 streaming path
    print("KERNEL_OK")
</pallas_src>

<mosaic_0001>
module attributes {stable_mosaic.version = 11 : i64} {
  func.func @_custom_loss_kernel(%arg0: i32, %arg1: i32, %arg2: memref<16x128xf32, #tpu.memory_space<vmem>>, %arg3: memref<16x128xf32, #tpu.memory_space<vmem>>, %arg4: memref<16x128xf32, #tpu.memory_space<vmem>>, %arg5: memref<8x128xf32, #tpu.memory_space<vmem>>, %arg6: memref<8x128xf32, #tpu.memory_space<vmem>>, %arg7: memref<8x128xf32, #tpu.memory_space<vmem>>, %arg8: memref<8x128xf32, #tpu.memory_space<vmem>>, %arg9: memref<8x128xf32, #tpu.memory_space<vmem>>, %arg10: memref<8x128xf32, #tpu.memory_space<vmem>>) attributes {dimension_semantics = [#tpu.dimension_semantics<parallel>, #tpu.dimension_semantics<arbitrary>], iteration_bounds = array<i64: 1, 1>, scalar_prefetch = 0 : i64, scratch_operands = 3 : i64, tpu.core_type = #tpu.core_type<tc>, window_params = [{transform_indices = @transform_0, window_bounds = array<i64: 16, 128>}, {transform_indices = @transform_1, window_bounds = array<i64: 16, 128>}, {transform_indices = @transform_2, window_bounds = array<i64: 16, 128>}, {transform_indices = @transform_3, window_bounds = array<i64: 8, 128>}, {transform_indices = @transform_4, window_bounds = array<i64: 8, 128>}, {transform_indices = @transform_5, window_bounds = array<i64: 8, 128>}]} {
    %c0_i32 = arith.constant 0 : i32
    %0 = arith.cmpi eq, %arg1, %c0_i32 : i32
    %1 = arith.extui %0 : i1 to i32
    %c0_i32_0 = arith.constant 0 : i32
    %2 = arith.cmpi ne, %1, %c0_i32_0 : i32
    scf.if %2 {
      %cst_20 = arith.constant -3.40282347E+38 : f32
      %41 = vector.broadcast %cst_20 : f32 to vector<8x128xf32>
      %c0_21 = arith.constant 0 : index
      %c0_22 = arith.constant 0 : index
      %42 = vector.load %arg8[%c0_21, %c0_22] : memref<8x128xf32, #tpu.memory_space<vmem>>, vector<8x128xf32>
      tpu.vector_store %arg8[%c0_21, %c0_22], %41 {strides = array<i32>} : memref<8x128xf32, #tpu.memory_space<vmem>>, vector<8x128xf32>,
      %cst_23 = arith.constant 0.000000e+00 : f32
      %43 = vector.broadcast %cst_23 : f32 to vector<8x128xf32>
      %c0_24 = arith.constant 0 : index
      %c0_25 = arith.constant 0 : index
      %44 = vector.load %arg9[%c0_24, %c0_25] : memref<8x128xf32, #tpu.memory_space<vmem>>, vector<8x128xf32>
      tpu.vector_store %arg9[%c0_24, %c0_25], %43 {strides = array<i32>} : memref<8x128xf32, #tpu.memory_space<vmem>>, vector<8x128xf32>,
      %cst_26 = arith.constant 0.000000e+00 : f32
      %45 = vector.broadcast %cst_26 : f32 to vector<8x128xf32>
      %c0_27 = arith.constant 0 : index
      %c0_28 = arith.constant 0 : index
      %46 = vector.load %arg10[%c0_27, %c0_28] : memref<8x128xf32, #tpu.memory_space<vmem>>, vector<8x128xf32>
      tpu.vector_store %arg10[%c0_27, %c0_28], %45 {strides = array<i32>} : memref<8x128xf32, #tpu.memory_space<vmem>>, vector<8x128xf32>,
    } else {
    }
    %c0 = arith.constant 0 : index
    %c0_1 = arith.constant 0 : index
    %3 = vector.load %arg8[%c0, %c0_1] : memref<8x128xf32, #tpu.memory_space<vmem>>, vector<8x128xf32>
    %c0_2 = arith.constant 0 : index
    %c0_3 = arith.constant 0 : index
    %4 = vector.load %arg9[%c0_2, %c0_3] : memref<8x128xf32, #tpu.memory_space<vmem>>, vector<8x128xf32>
    %c0_4 = arith.constant 0 : index
    %c0_5 = arith.constant 0 : index
    %5 = vector.load %arg10[%c0_4, %c0_5] : memref<8x128xf32, #tpu.memory_space<vmem>>, vector<8x128xf32>
    %c0_i32_6 = arith.constant 0 : i32
    %c16_i32 = arith.constant 16 : i32
    %6 = arith.muli %c0_i32_6, %c16_i32 : i32
    %7 = tpu.assume_multiple %6, 16 : i32
    %8 = arith.index_cast %7 : i32 to index
    %c0_7 = arith.constant 0 : index
    %9 = vector.load %arg2[%8, %c0_7] : memref<16x128xf32, #tpu.memory_space<vmem>>, vector<16x128xf32>
    %10 = arith.index_cast %7 : i32 to index
    %c0_8 = arith.constant 0 : index
    %11 = vector.load %arg3[%10, %c0_8] : memref<16x128xf32, #tpu.memory_space<vmem>>, vector<16x128xf32>
    %12 = arith.index_cast %7 : i32 to index
    %c0_9 = arith.constant 0 : index
    %13 = vector.load %arg4[%12, %c0_9] : memref<16x128xf32, #tpu.memory_space<vmem>>, vector<16x128xf32>
    %14 = arith.subf %11, %9 : vector<16x128xf32>
    %15 = math.absf %14 : vector<16x128xf32>
    %16 = arith.subf %11, %13 : vector<16x128xf32>
    %17 = math.absf %16 : vector<16x128xf32>
    %18 = vector.shape_cast %15 : vector<16x128xf32> to vector<2x8x128xf32>
    %19 = vector.shape_cast %17 : vector<16x128xf32> to vector<2x8x128xf32>
    %cst = arith.constant dense<0xFF800000> : vector<8x128xf32>
    %20 = vector.multi_reduction <maximumf>, %18, %cst [0] : vector<2x8x128xf32> to vector<8x128xf32>
    %21 = arith.maximumf %3, %20 : vector<8x128xf32>
    %22 = arith.subf %3, %21 : vector<8x128xf32>
    %23 = math.exp %22 : vector<8x128xf32>
    %24 = vector.shape_cast %21 : vector<8x128xf32> to vector<1x8x128xf32>
    %25 = vector.broadcast %24 : vector<1x8x128xf32> to vector<2x8x128xf32>
    %26 = arith.subf %18, %25 : vector<2x8x128xf32>
    %27 = math.exp %26 : vector<2x8x128xf32>
    %28 = arith.mulf %4, %23 : vector<8x128xf32>
    %cst_10 = arith.constant dense<0.000000e+00> : vector<8x128xf32>
    %29 = vector.multi_reduction <add>, %27, %cst_10 [0] : vector<2x8x128xf32> to vector<8x128xf32>
    %30 = arith.addf %28, %29 : vector<8x128xf32>
    %31 = arith.mulf %5, %23 : vector<8x128xf32>
    %32 = arith.mulf %27, %19 : vector<2x8x128xf32>
    %cst_11 = arith.constant dense<0.000000e+00> : vector<8x128xf32>
    %33 = vector.multi_reduction <add>, %32, %cst_11 [0] : vector<2x8x128xf32> to vector<8x128xf32>
    %34 = arith.addf %31, %33 : vector<8x128xf32>
    %c1_i32 = arith.constant 1 : i32
    %c0_12 = arith.constant 0 : index
    %c0_13 = arith.constant 0 : index
    %35 = vector.load %arg8[%c0_12, %c0_13] : memref<8x128xf32, #tpu.memory_space<vmem>>, vector<8x128xf32>
    tpu.vector_store %arg8[%c0_12, %c0_13], %21 {strides = array<i32>} : memref<8x128xf32, #tpu.memory_space<vmem>>, vector<8x128xf32>,
    %c0_14 = arith.constant 0 : index
    %c0_15 = arith.constant 0 : index
    %36 = vector.load %arg9[%c0_14, %c0_15] : memref<8x128xf32, #tpu.memory_space<vmem>>, vector<8x128xf32>
    tpu.vector_store %arg9[%c0_14, %c0_15], %30 {strides = array<i32>} : memref<8x128xf32, #tpu.memory_space<vmem>>, vector<8x128xf32>,
    %c0_16 = arith.constant 0 : index
    %c0_17 = arith.constant 0 : index
    %37 = vector.load %arg10[%c0_16, %c0_17] : memref<8x128xf32, #tpu.memory_space<vmem>>, vector<8x128xf32>
    tpu.vector_store %arg10[%c0_16, %c0_17], %34 {strides = array<i32>} : memref<8x128xf32, #tpu.memory_space<vmem>>, vector<8x128xf32>,
    %c0_i32_18 = arith.constant 0 : i32
    %38 = arith.cmpi eq, %arg1, %c0_i32_18 : i32
    %39 = arith.extui %38 : i1 to i32
    %c0_i32_19 = arith.constant 0 : i32
    %40 = arith.cmpi ne, %39, %c0_i32_19 : i32
    scf.if %40 {
      %c0_20 = arith.constant 0 : index
      %c0_21 = arith.constant 0 : index
      %41 = vector.load %arg8[%c0_20, %c0_21] : memref<8x128xf32, #tpu.memory_space<vmem>>, vector<8x128xf32>
      %c0_22 = arith.constant 0 : index
      %c0_23 = arith.constant 0 : index
      %42 = vector.load %arg5[%c0_22, %c0_23] : memref<8x128xf32, #tpu.memory_space<vmem>>, vector<8x128xf32>
      tpu.vector_store %arg5[%c0_22, %c0_23], %41 {strides = array<i32>} : memref<8x128xf32, #tpu.memory_space<vmem>>, vector<8x128xf32>,
      %c0_24 = arith.constant 0 : index
      %c0_25 = arith.constant 0 : index
      %43 = vector.load %arg9[%c0_24, %c0_25] : memref<8x128xf32, #tpu.memory_space<vmem>>, vector<8x128xf32>
      %c0_26 = arith.constant 0 : index
      %c0_27 = arith.constant 0 : index
      %44 = vector.load %arg6[%c0_26, %c0_27] : memref<8x128xf32, #tpu.memory_space<vmem>>, vector<8x128xf32>
      tpu.vector_store %arg6[%c0_26, %c0_27], %43 {strides = array<i32>} : memref<8x128xf32, #tpu.memory_space<vmem>>, vector<8x128xf32>,
      %c0_28 = arith.constant 0 : index
      %c0_29 = arith.constant 0 : index
      %45 = vector.load %arg10[%c0_28, %c0_29] : memref<8x128xf32, #tpu.memory_space<vmem>>, vector<8x128xf32>
      %c0_30 = arith.constant 0 : index
      %c0_31 = arith.constant 0 : index
      %46 = vector.load %arg7[%c0_30, %c0_31] : memref<8x128xf32, #tpu.memory_space<vmem>>, vector<8x128xf32>
      tpu.vector_store %arg7[%c0_30, %c0_31], %45 {strides = array<i32>} : memref<8x128xf32, #tpu.memory_space<vmem>>, vector<8x128xf32>,
    } else {
    }
    return
  }
  func.func @transform_0(%arg0: i32, %arg1: i32) -> (i32, i32) {
    %c1_i32 = arith.constant 1 : i32
    %0 = arith.muli %arg0, %c1_i32 : i32
    %1 = arith.addi %0, %arg1 : i32
    %c0_i32 = arith.constant 0 : i32
    %c0_i32_0 = arith.constant 0 : i32
    return %1, %c0_i32 : i32, i32
  }
  func.func @transform_1(%arg0: i32, %arg1: i32) -> (i32, i32) {
    %c1_i32 = arith.constant 1 : i32
    %0 = arith.muli %arg0, %c1_i32 : i32
    %1 = arith.addi %0, %arg1 : i32
    %c0_i32 = arith.constant 0 : i32
    %c0_i32_0 = arith.constant 0 : i32
    return %1, %c0_i32 : i32, i32
  }
  func.func @transform_2(%arg0: i32, %arg1: i32) -> (i32, i32) {
    %c1_i32 = arith.constant 1 : i32
    %0 = arith.muli %arg0, %c1_i32 : i32
    %1 = arith.addi %0, %arg1 : i32
    %c0_i32 = arith.constant 0 : i32
    %c0_i32_0 = arith.constant 0 : i32
    return %1, %c0_i32 : i32, i32
  }
  func.func @transform_3(%arg0: i32, %arg1: i32) -> (i32, i32) {
    %c0_i32 = arith.constant 0 : i32
    %c0_i32_0 = arith.constant 0 : i32
    return %arg0, %c0_i32 : i32, i32
  }
  func.func @transform_4(%arg0: i32, %arg1: i32) -> (i32, i32) {
    %c0_i32 = arith.constant 0 : i32
    %c0_i32_0 = arith.constant 0 : i32
    return %arg0, %c0_i32 : i32, i32
  }
  func.func @transform_5(%arg0: i32, %arg1: i32) -> (i32, i32) {
    %c0_i32 = arith.constant 0 : i32
    %c0_i32_0 = arith.constant 0 : i32
    return %arg0, %c0_i32 : i32, i32
  }
}

</mosaic_0001>

<llo_original>
// kernel: tpu_custom_call.1
$region0: #{tpu_custom_call.1}
  #allocation0 [shape = 'u32[]', space=smem, size = 0x4, offset = 0x4, fixed_abs, tag = 'smem constant byte address 0x4 - core index']
  #allocation1 [shape = 'u32[72,128]{1,0:T(1,128)}', space=vmem, size = 0x9000, scoped, tag = 'internal scratch']
  #allocation2 [shape = 'f32[8,128]{1,0:T(8,128)}', space=vmem, size = 0x1000, scoped, tag = 'scratch operand']
  #allocation3 [shape = 'f32[8,128]{1,0:T(8,128)}', space=vmem, size = 0x1000, scoped, tag = 'scratch operand']
  #allocation4 [shape = 'f32[8,128]{1,0:T(8,128)}', space=vmem, size = 0x1000, scoped, tag = 'scratch operand']
  %s0 = inlined_call_operand.hbm [shape: f32[16,128], index: 0, kind: input, shape index: {}]
  %s1 = inlined_call_operand.hbm [shape: f32[16,128], index: 1, kind: input, shape index: {}]
  %s2 = inlined_call_operand.hbm [shape: f32[16,128], index: 2, kind: input, shape index: {}]
  %s3 = inlined_call_operand.hbm [shape: f32[8,128], index: 3, kind: output, shape index: {0}]
  %s4 = inlined_call_operand.hbm [shape: f32[8,128], index: 4, kind: output, shape index: {1}]
  %s5 = inlined_call_operand.hbm [shape: f32[8,128], index: 5, kind: output, shape index: {2}]
  %6 = xla_tuple %s3, %s4, %s5
  %s7 = sld [smem:[#allocation0]]
  $region58: #{tpu_custom_call.1} parent=0
    _
  %s9 = ssub.s32 1, %s7
  %s10 = scalar_select 0, %s9, %s7
  $region1: #{tpu_custom_call.1} parent=0
    #allocation5 [shape = 'u8[8192]{0}', space=vmem, size = 0x2000, scoped, tag = 'input window, operand 0, single buffered']
    #allocation6 [shape = 's32[1]{0}', space=sflag, size = 0x4, scoped, tag = 'scoped memory for tpu_custom_call.1']
    #allocation7 [shape = 's32[1]{0}', space=sflag, size = 0x4, scoped, tag = 'scoped memory for tpu_custom_call.1']
    #allocation8 [shape = 'u8[8192]{0}', space=vmem, size = 0x2000, scoped, tag = 'input window, operand 1, single buffered']
    #allocation9 [shape = 's32[1]{0}', space=sflag, size = 0x4, scoped, tag = 'scoped memory for tpu_custom_call.1']
    #allocation10 [shape = 'u8[8192]{0}', space=vmem, size = 0x2000, scoped, tag = 'input window, operand 2, single buffered']
    #allocation11 [shape = 'u8[4096]{0}', space=vmem, size = 0x1000, scoped, tag = 'output window, operand 0, single buffered']
    #allocation12 [shape = 'u8[4096]{0}', space=vmem, size = 0x1000, scoped, tag = 'output window, operand 1, single buffered']
    #allocation13 [shape = 's32[1]{0}', space=sflag, size = 0x4, scoped, tag = 'scoped memory for tpu_custom_call.1']
    #allocation14 [shape = 'u8[4096]{0}', space=vmem, size = 0x1000, scoped, tag = 'output window, operand 2, single buffered']
    %11 = vsyncpa [#allocation6], 0
    %12 = vsyncpa [#allocation9], 0
    %13 = vsyncpa [#allocation7], 0
    %14 = vsyncpa [#allocation13], 0
    // Predicated region
    $region2: #{tpu_custom_call.1} parent=1 // pred_check
      _
    $region3: #{tpu_custom_call.1} parent=1 // pred_check_branch
      %16 = sbr.rel (0) target = $region5
    $region4: #{tpu_custom_call.1} parent=1 // pred_region
      %s17 = sadd.s32 0, 0
      %s18 = smul.u32 2, %s17
      %20 = vsyncadd [#allocation6], 0
      %s21 = smul.addr %s18, 8
      %s22 = scalar_lea.hbm %s0, %s21
      %s23 = sshll.u32 %s22, 4
      %s24 = int_to_ptr.hbm [resolvable:$true] %s23
      %s25 = sshll.u32 [#allocation5], 4
      %s26 = int_to_ptr.vmem [resolvable:$true] %s25
      %31 = dma.hbm_to_vmem [thread:$0]  %s24, 256, %s26, [#allocation6], 128, 128, 8
    $region5: #{tpu_custom_call.1} parent=1 // pred_fallthru
      _
    // Predicated region
    $region6: #{tpu_custom_call.1} parent=1 // pred_check
      _
    $region7: #{tpu_custom_call.1} parent=1 // pred_check_branch
      %33 = sbr.rel (0) target = $region9
    $region8: #{tpu_custom_call.1} parent=1 // pred_region
      %s34 = sadd.s32 0, 0
      %s35 = smul.u32 2, %s34
      %37 = vsyncadd [#allocation9], 0
      %s38 = smul.addr %s35, 8
      %s39 = scalar_lea.hbm %s1, %s38
      %s40 = sshll.u32 %s39, 4
      %s41 = int_to_ptr.hbm [resolvable:$true] %s40
      %s42 = sshll.u32 [#allocation8], 4
      %s43 = int_to_ptr.vmem [resolvable:$true] %s42
      %48 = dma.hbm_to_vmem [thread:$0]  %s41, 256, %s43, [#allocation9], 128, 128, 8
    $region9: #{tpu_custom_call.1} parent=1 // pred_fallthru
      _
    // Predicated region
    $region10: #{tpu_custom_call.1} parent=1 // pred_check
      _
    $region11: #{tpu_custom_call.1} parent=1 // pred_check_branch
      %50 = sbr.rel (0) target = $region13
    $region12: #{tpu_custom_call.1} parent=1 // pred_region
      %s51 = sadd.s32 0, 0
      %s52 = smul.u32 2, %s51
      %54 = vsyncadd [#allocation9], 0
      %s55 = smul.addr %s52, 8
      %s56 = scalar_lea.hbm %s2, %s55
      %s57 = sshll.u32 %s56, 4
      %s58 = int_to_ptr.hbm [resolvable:$true] %s57
      %s59 = sshll.u32 [#allocation10], 4
      %s60 = int_to_ptr.vmem [resolvable:$true] %s59
      %65 = dma.hbm_to_vmem [thread:$0]  %s58, 256, %s60, [#allocation9], 128, 128, 8
    $region13: #{tpu_custom_call.1} parent=1 // pred_fallthru
      _
    // Predicated region
    $region14: #{tpu_custom_call.1} parent=1 // pred_check
      _
    $region15: #{tpu_custom_call.1} parent=1 // pred_check_branch
      %67 = sbr.rel (0) target = $region17
    $region16: #{tpu_custom_call.1} parent=1 // pred_region
      %69 = dma.done [#allocation6], 256
    $region17: #{tpu_custom_call.1} parent=1 // pred_fallthru
      _
    // Predicated region
    $region18: #{tpu_custom_call.1} parent=1 // pred_check
      _
    $region19: #{tpu_custom_call.1} parent=1 // pred_check_branch
      %71 = sbr.rel (0) target = $region21
    $region20: #{tpu_custom_call.1} parent=1 // pred_region
      %73 = dma.done [#allocation9], 256
    $region21: #{tpu_custom_call.1} parent=1 // pred_fallthru
      _
    // Predicated region
    $region22: #{tpu_custom_call.1} parent=1 // pred_check
      _
    $region23: #{tpu_custom_call.1} parent=1 // pred_check_branch
      %75 = sbr.rel (0) target = $region25
    $region24: #{tpu_custom_call.1} parent=1 // pred_region
      %77 = dma.done [#allocation9], 256
    $region25: #{tpu_custom_call.1} parent=1 // pred_fallthru
      _
    %s78 = sadd.s32 0, 0
    %s79 = smul.u32 2, %s78
    %s80 = sadd.s32 0, 0
    %s81 = smul.u32 2, %s80
    %s82 = sadd.s32 0, 0
    %s83 = smul.u32 2, %s82
    %p84 = scmp.eq.s32.totalorder 0, 0
    // Predicated region
    $region26: #{tpu_custom_call.1} parent=1 // pred_check
      %p85 = pneg %p84
    $region27: #{tpu_custom_call.1} parent=1 // pred_check_branch
      %87 = sbr.rel (%p85) target = $region29
    $region28: #{tpu_custom_call.1} parent=1 // pred_region
      %88 = vst [vmem:[#allocation2] sm:$0xff] -3.4028235e+38
      %89 = vst [vmem:[#allocation3] sm:$0xff] 0.0
      %90 = vst [vmem:[#allocation4] sm:$0xff] 0.0
    $region29: #{tpu_custom_call.1} parent=1 // pred_fallthru
      _
    %v91 = vld [vmem:[#allocation2] sm:$0xff]
    %v92 = vld [vmem:[#allocation3] sm:$0xff]
    %v93 = vld [vmem:[#allocation4] sm:$0xff]
    %v94 = vld [vmem:[#allocation5] sm:$0xff]
    %v95 = vld [vmem:[#allocation5 + $0x8] sm:$0xff]
    %v96 = vld [vmem:[#allocation8] sm:$0xff]
    %v97 = vld [vmem:[#allocation8 + $0x8] sm:$0xff]
    %v98 = vld [vmem:[#allocation10] sm:$0xff]
    %v99 = vld [vmem:[#allocation10 + $0x8] sm:$0xff]
    %v100 = vsub.f32 %v96, %v94
    %v101 = vsub.f32 %v97, %v95
    %v102 = vand.u32 2147483647, %v100
    %v103 = vand.u32 2147483647, %v101
    %v104 = vsub.f32 %v96, %v98
    %v105 = vsub.f32 %v97, %v99
    %v106 = vand.u32 2147483647, %v104
    %v107 = vand.u32 2147483647, %v105
    %v108 = vmax.f32 %v102, %v103
    %v109 = vmax.f32 %v91, %v108
    %v110 = vsub.f32 %v91, %v109
    %v111 = vmul.f32 %v110, 1.442695
    %v112 = vpow.pop %v111
    %v113 = vsub.f32 %v102, %v109
    %v114 = vsub.f32 %v103, %v109
    %v115 = vmul.f32 %v113, 1.442695
    %v116 = vpow.pop %v115
    %v117 = vmul.f32 %v114, 1.442695
    %v118 = vpow.pop %v117
    %v119 = vmul.f32 %v92, %v112
    %v120 = vadd.f32 %v116, %v118
    %v121 = vadd.f32 %v119, %v120
    %v122 = vmul.f32 %v93, %v112
    %v123 = vmul.f32 %v116, %v106
    %v124 = vmul.f32 %v118, %v107
    %v125 = vadd.f32 %v123, %v124
    %v126 = vadd.f32 %v122, %v125
    %127 = vst [vmem:[#allocation2] sm:$0xff] %v109
    %128 = vst [vmem:[#allocation3] sm:$0xff] %v121
    %129 = vst [vmem:[#allocation4] sm:$0xff] %v126
    // Predicated region
    $region30: #{tpu_custom_call.1} parent=1 // pred_check
      %p130 = pneg %p84
    $region31: #{tpu_custom_call.1} parent=1 // pred_check_branch
      %132 = sbr.rel (%p130) target = $region33
    $region32: #{tpu_custom_call.1} parent=1 // pred_region
      %v133 = vld [vmem:[#allocation2] sm:$0xff]
      %134 = vst [vmem:[#allocation11] sm:$0xff] %v133
      %v135 = vld [vmem:[#allocation3] sm:$0xff]
      %136 = vst [vmem:[#allocation12] sm:$0xff] %v135
      %v137 = vld [vmem:[#allocation4] sm:$0xff]
      %138 = vst [vmem:[#allocation14] sm:$0xff] %v137
    $region33: #{tpu_custom_call.1} parent=1 // pred_fallthru
      _
    // Predicated region
    $region34: #{tpu_custom_call.1} parent=1 // pred_check
      _
    $region35: #{tpu_custom_call.1} parent=1 // pred_check_branch
      %140 = sbr.rel (0) target = $region37
    $region36: #{tpu_custom_call.1} parent=1 // pred_region
      %142 = vsyncadd [#allocation7], 0
      %s144 = sshll.u32 [#allocation11], 4
      %s145 = int_to_ptr.vmem [resolvable:$true] %s144
      %s146 = sshll.u32 %s3, 4
      %s147 = int_to_ptr.hbm [resolvable:$true] %s146
      %149 = dma.vmem_to_hbm [thread:$0]  %s145, 128, %s147, [#allocation7]
    $region37: #{tpu_custom_call.1} parent=1 // pred_fallthru
      _
    // Predicated region
    $region38: #{tpu_custom_call.1} parent=1 // pred_check
      _
    $region39: #{tpu_custom_call.1} parent=1 // pred_check_branch
      %151 = sbr.rel (0) target = $region41
    $region40: #{tpu_custom_call.1} parent=1 // pred_region
      %153 = vsyncadd [#allocation13], 0
      %s155 = sshll.u32 [#allocation12], 4
      %s156 = int_to_ptr.vmem [resolvable:$true] %s155
      %s157 = sshll.u32 %s4, 4
      %s158 = int_to_ptr.hbm [resolvable:$true] %s157
      %160 = dma.vmem_to_hbm [thread:$0]  %s156, 128, %s158, [#allocation13]
    $region41: #{tpu_custom_call.1} parent=1 // pred_fallthru
      _
    // Predicated region
    $region42: #{tpu_custom_call.1} parent=1 // pred_check
      _
    $region43: #{tpu_custom_call.1} parent=1 // pred_check_branch
      %162 = sbr.rel (0) target = $region45
    $region44: #{tpu_custom_call.1} parent=1 // pred_region
      %164 = vsyncadd [#allocation13], 0
      %s166 = sshll.u32 [#allocation14], 4
      %s167 = int_to_ptr.vmem [resolvable:$true] %s166
      %s168 = sshll.u32 %s5, 4
      %s169 = int_to_ptr.hbm [resolvable:$true] %s168
      %171 = dma.vmem_to_hbm [thread:$0]  %s167, 128, %s169, [#allocation13]
    $region45: #{tpu_custom_call.1} parent=1 // pred_fallthru
      _
    // Predicated region
    $region46: #{tpu_custom_call.1} parent=1 // pred_check
      _
    $region47: #{tpu_custom_call.1} parent=1 // pred_check_branch
      %173 = sbr.rel (0) target = $region49
    $region48: #{tpu_custom_call.1} parent=1 // pred_region
      %175 = dma.done [#allocation7], 128
    $region49: #{tpu_custom_call.1} parent=1 // pred_fallthru
      _
    // Predicated region
    $region50: #{tpu_custom_call.1} parent=1 // pred_check
      _
    $region51: #{tpu_custom_call.1} parent=1 // pred_check_branch
      %177 = sbr.rel (0) target = $region53
    $region52: #{tpu_custom_call.1} parent=1 // pred_region
      %179 = dma.done [#allocation13], 128
    $region53: #{tpu_custom_call.1} parent=1 // pred_fallthru
      _
    // Predicated region
    $region54: #{tpu_custom_call.1} parent=1 // pred_check
      _
    $region55: #{tpu_custom_call.1} parent=1 // pred_check_branch
      %181 = sbr.rel (0) target = $region57
    $region56: #{tpu_custom_call.1} parent=1 // pred_region
      %183 = dma.done [#allocation13], 128
    $region57: #{tpu_custom_call.1} parent=1 // pred_fallthru
      _
    %184 = vsyncpa [#allocation6], 1
    %185 = vsyncpa [#allocation9], 1
    %186 = vsyncpa [#allocation7], 1
    %187 = vsyncpa [#allocation13], 1

</llo_original>
